<compile_context>
chip_gen: v7x
topology: tpu7x:2x2x1
jax: 0.10.0
libtpu: 0.0.40
codegen_flags: <defaults>
</compile_context>

<pallas_src>
import functools

import jax
import jax.numpy as jnp
from jax.experimental import pallas as pl
from jax.experimental.pallas import tpu as pltpu


def _leaky_relu(x, slope=0.2):
    return jnp.where(x > 0, x, slope * x)


def _round8(n):
    return (n + 7) // 8 * 8


def _bias_layout(E, Z, H1, H2):
    """Sublane-aligned row offsets of each bias inside the packed (TOT,1) column."""
    o1 = 0
    o2 = o1 + _round8(H1)
    oh = o2 + _round8(H2)
    od1 = oh + _round8(2 * Z)
    od2 = od1 + _round8(H1)
    total = _round8(od2 + _round8(E))
    return o1, o2, oh, od1, od2, total


# ----------------------------------------------------------------------------
# Kernel (feature-major: activations are (features, batch_tile))
# ----------------------------------------------------------------------------

def vae_kernel(
    xe_ref,   # (E+Z, tb)  packed [x ; eps], feature-major
    w1_ref,   # (H1, E )   encoder[0]   emb -> 50 (rows padded to 64)
    w2_ref,   # (H2, H1)   encoder[2]   50  -> 25 (padded 64 -> 32)
    wh_ref,   # (2Z, H2)   fused heads  [mean ; logstd]
    wd1_ref,  # (H1, Z )   decoder[0]   z   -> 50 (rows padded to 64)
    wd2_ref,  # (E,  H1)   decoder[2]   50  -> emb (cols padded to 64)
    b_ref,    # (TOT, 1)   packed bias column
    out_ref,  # (E+2Z, tb) = [out ; mean ; logstd]
    *, E, Z, H1, H2,
):
    f32 = jnp.float32
    o1, o2, oh, od1, od2, _ = _bias_layout(E, Z, H1, H2)

    x = xe_ref[0:E, :]          # (E, tb)
    eps = xe_ref[E:E + Z, :]    # (Z, tb)

    # packed biases: one DMA, static sublane-aligned row slices, broadcast over lanes
    b1 = b_ref[o1:o1 + H1, :]
    b2 = b_ref[o2:o2 + H2, :]
    bh = b_ref[oh:oh + 2 * Z, :]
    bd1 = b_ref[od1:od1 + H1, :]
    bd2 = b_ref[od2:od2 + E, :]

    # encoder: Linear -> LeakyReLU(0.2) -> Linear -> LeakyReLU(0.2)   (y^T = W @ x^T)
    h1 = _leaky_relu(jnp.dot(w1_ref[...], x, preferred_element_type=f32) + b1)
    h2 = _leaky_relu(jnp.dot(w2_ref[...], h1, preferred_element_type=f32) + b2)

    # fused mean/logstd heads: one matmul, split along sublanes (tile-aligned for Z%8==0)
    heads = jnp.dot(wh_ref[...], h2, preferred_element_type=f32) + bh   # (2Z, tb)
    mean = heads[0:Z, :]
    logstd = heads[Z:2 * Z, :]

    # reparameterization: z = mean + eps * exp(logstd)
    z = mean + eps.astype(f32) * jnp.exp(logstd)

    # decoder: Linear -> ReLU -> Linear
    d1 = jnp.maximum(jnp.dot(wd1_ref[...], z, preferred_element_type=f32) + bd1, 0.0)
    out = jnp.dot(wd2_ref[...], d1, preferred_element_type=f32) + bd2    # (E, tb)

    # three direct slice stores (lane-dense, no concat temp)
    out_ref[0:E, :] = out.astype(out_ref.dtype)
    out_ref[E:E + Z, :] = mean.astype(out_ref.dtype)
    out_ref[E + Z:E + 2 * Z, :] = logstd.astype(out_ref.dtype)


# ----------------------------------------------------------------------------
# Parameter construction / packing
# ----------------------------------------------------------------------------

def init_raw_params(key, embedding_dimension, z_dimension, dtype=jnp.float32):
    """PyTorch-like uniform fan-in init; weights in PyTorch (out, in) layout."""
    E, Z = embedding_dimension, z_dimension
    dims = [(E, 50), (50, 25), (25, Z), (25, Z), (Z, 50), (50, E)]
    raw = []
    for fan_in, fan_out in dims:
        key, kw, kb = jax.random.split(key, 3)
        bound = 1.0 / (fan_in ** 0.5)
        w = jax.random.uniform(kw, (fan_out, fan_in), dtype, -bound, bound)
        b = jax.random.uniform(kb, (fan_out,), dtype, -bound, bound)
        raw.append((w, b))
    return raw


def pack_params(raw, embedding_dimension, z_dimension, dtype=jnp.float32):
    """Zero-pad hidden dims (50->64, 25->32), fuse heads, pack biases into one column.

    Pass dtype=jnp.bfloat16 on v6e/v7x to halve parameter DMA bytes (matmuls
    still accumulate in f32).
    """
    E, Z = embedding_dimension, z_dimension
    H1, H2 = 64, 32
    (w1, b1), (w2, b2), (wm, bm), (wl, bl), (wd1, bd1), (wd2, bd2) = raw

    def pad_to(a, shape):
        return jnp.pad(a, [(0, s - d) for d, s in zip(a.shape, shape)])

    W1 = pad_to(w1, (H1, E))
    W2 = pad_to(w2, (H2, H1))
    Wh = pad_to(jnp.concatenate([wm, wl], axis=0), (2 * Z, H2))
    Wd1 = pad_to(wd1, (H1, Z))
    Wd2 = pad_to(wd2, (E, H1))

    o1, o2, oh, od1, od2, total = _bias_layout(E, Z, H1, H2)
    Bcol = jnp.zeros((total, 1), dtype)

    def put(buf, off, vec):
        return buf.at[off:off + vec.shape[0], 0].set(vec.astype(dtype))

    Bcol = put(Bcol, o1, b1)
    Bcol = put(Bcol, o2, b2)
    Bcol = put(Bcol, oh, jnp.concatenate([bm, bl]))
    Bcol = put(Bcol, od1, bd1)
    Bcol = put(Bcol, od2, bd2)

    return tuple(a.astype(dtype) for a in (W1, W2, Wh, Wd1, Wd2)) + (Bcol,)


# ----------------------------------------------------------------------------
# Wrapper
# ----------------------------------------------------------------------------

def _pick_tb(B):
    """Biggest tile that comfortably fits: per-step overhead dominates otherwise.

    f32 streams are ~352 B/row, so tb=8192 double-buffered is < 6 MiB — inside
    even v5e's 16 MiB default scoped VMEM (v6e 32/128 MiB, v7x 32/64 MiB).
    """
    if B <= 8192:
        return B
    for tb in (8192, 4096, 2048, 1024, 512, 256, 128):
        if B % tb == 0:
            return tb
    return B  # ragged large batch: single tile (lane rule requires tb == B otherwise)


def _batch_dim_semantics(num_steps):
    """Only CORE_PARALLEL actually shards a grid axis across v7x's 2 TensorCores;
    "parallel" vs "arbitrary" is a codegen no-op.  v5e/v6e have a single TC."""
    kind = ""
    try:
        kind = jax.devices()[0].device_kind.lower()
    except Exception:
        pass
    if ("v7" in kind or "tpu7" in kind) and num_steps % 2 == 0:
        return (pltpu.CORE_PARALLEL,)
    return ("parallel",)


def vae_forward_packed(xe_t, params, *, tb=None):
    """Core entry point.

    xe_t: (E+Z, B) feature-major packed slab [x ; eps].
    Returns the feature-major slab (E+2Z, B) = [out ; mean ; logstd].
    """
    W1, W2, Wh, Wd1, Wd2, Bcol = params
    H1, E = W1.shape
    H2 = W2.shape[0]
    Z = Wd1.shape[1]
    FIN, B = xe_t.shape
    assert FIN == E + Z
    OUTF = E + 2 * Z

    if tb is None:
        tb = _pick_tb(B)
    assert B % tb == 0, "batch must be divisible by the batch tile"
    # batch lives on the 128-lane axis -> tile must be lane-legal
    assert tb == B or tb % 128 == 0, (
        "batch tile must equal the full batch or be a multiple of 128")

    steps = B // tb
    kernel = functools.partial(vae_kernel, E=E, Z=Z, H1=H1, H2=H2)

    flops = 2 * B * (E * H1 + H1 * H2 + H2 * 2 * Z + Z * H1 + H1 * E)
    bytes_accessed = (
        sum(int(a.size) * a.dtype.itemsize for a in (xe_t, *params))
        + B * OUTF * xe_t.dtype.itemsize
    )

    const = lambda i: (0, 0)  # parameters: same block every step -> VMEM-resident

    slab = pl.pallas_call(
        kernel,
        out_shape=jax.ShapeDtypeStruct((OUTF, B), xe_t.dtype),
        grid=(steps,),
        in_specs=[
            pl.BlockSpec((FIN, tb), lambda i: (0, i)),   # packed [x ; eps] slab
            pl.BlockSpec(W1.shape, const),
            pl.BlockSpec(W2.shape, const),
            pl.BlockSpec(Wh.shape, const),
            pl.BlockSpec(Wd1.shape, const),
            pl.BlockSpec(Wd2.shape, const),
            pl.BlockSpec(Bcol.shape, const),
        ],
        out_specs=pl.BlockSpec((OUTF, tb), lambda i: (0, i)),
        compiler_params=pltpu.CompilerParams(
            dimension_semantics=_batch_dim_semantics(steps)),
        cost_estimate=pl.CostEstimate(
            flops=flops, transcendentals=B * Z, bytes_accessed=bytes_accessed),
    )(xe_t, W1, W2, Wh, Wd1, Wd2, Bcol)
    return slab


def vae_forward(x, eps, params, *, tb=None):
    """PyTorch-interface convenience wrapper: x (B,E), eps (B,Z) -> (out, mean, logstd).

    Production callers should feed the feature-major packed slab directly via
    vae_forward_packed to avoid the XLA concat/transpose round-trips done here.
    """
    E = x.shape[1]
    Z = eps.shape[1]
    xe_t = jnp.concatenate([x, eps], axis=1).T            # (E+Z, B)
    slab = vae_forward_packed(xe_t, params, tb=tb)        # (E+2Z, B)
    out = slab[:E].T
    mean = slab[E:E + Z].T
    logstd = slab[E + Z:].T
    return out, mean, logstd


# ----------------------------------------------------------------------------
# Demo + correctness check
# ----------------------------------------------------------------------------

if __name__ == "__main__":
    embedding_dimension = 32
    z_dimension = 8
    batch = 256        # small demo batch
    batch_tile = 128   # 2 grid steps: exercises tiling (and the v7x core split)

    key = jax.random.PRNGKey(0)
    k_x, k_eps, k_params = jax.random.split(key, 3)

    x = jax.random.normal(k_x, (batch, embedding_dimension), jnp.float32)
    # torch.randn reparameterization noise -> deterministic JAX noise here.
    # (Could be generated in-kernel via pltpu.prng_seed/stateful_normal, but
    #  that changes the noise stream vs. the reference.)
    eps = jax.random.normal(k_eps, (batch, z_dimension), jnp.float32)

    raw = init_raw_params(k_params, embedding_dimension, z_dimension)
    params = pack_params(raw, embedding_dimension, z_dimension)

    out, mean, logstd = jax.block_until_ready(
        vae_forward(x, eps, params, tb=batch_tile))

    # Pure-JAX reference using the UNPADDED parameters (PyTorch (out,in) layout).
    (w1, b1), (w2, b2), (wm, bm), (wl, bl), (wd1, bd1), (wd2, bd2) = raw
    h1 = x @ w1.T + b1
    h1 = jnp.where(h1 > 0, h1, 0.2 * h1)
    h2 = h1 @ w2.T + b2
    h2 = jnp.where(h2 > 0, h2, 0.2 * h2)
    mean_r = h2 @ wm.T + bm
    logstd_r = h2 @ wl.T + bl
    z_r = mean_r + eps * jnp.exp(logstd_r)
    out_r = jnp.maximum(z_r @ wd1.T + bd1, 0.0) @ wd2.T + bd2

    assert jnp.allclose(mean, mean_r, atol=1e-4, rtol=1e-4)
    assert jnp.allclose(logstd, logstd_r, atol=1e-4, rtol=1e-4)
    assert jnp.allclose(out, out_r, atol=1e-4, rtol=1e-4)

    print("KERNEL_OK")
</pallas_src>

<mosaic_0001>
module attributes {stable_mosaic.version = 11 : i64} {
  func.func @vae_kernel(%arg0: i32, %arg1: memref<40x128xf32, #tpu.memory_space<vmem>>, %arg2: memref<64x32xf32, #tpu.memory_space<vmem>>, %arg3: memref<32x64xf32, #tpu.memory_space<vmem>>, %arg4: memref<16x32xf32, #tpu.memory_space<vmem>>, %arg5: memref<64x8xf32, #tpu.memory_space<vmem>>, %arg6: memref<32x64xf32, #tpu.memory_space<vmem>>, %arg7: memref<208x1xf32, #tpu.memory_space<vmem>>, %arg8: memref<48x128xf32, #tpu.memory_space<vmem>>) attributes {dimension_semantics = [#tpu.dimension_semantics<parallel>], iteration_bounds = array<i64: 2>, scalar_prefetch = 0 : i64, scratch_operands = 0 : i64, tpu.core_type = #tpu.core_type<tc>, window_params = [{transform_indices = @transform_0, window_bounds = array<i64: 40, 128>}, {pipeline_mode = #tpu.pipeline_mode<synchronous>, transform_indices = @transform_1, window_bounds = array<i64: 64, 32>}, {pipeline_mode = #tpu.pipeline_mode<synchronous>, transform_indices = @transform_2, window_bounds = array<i64: 32, 64>}, {pipeline_mode = #tpu.pipeline_mode<synchronous>, transform_indices = @transform_3, window_bounds = array<i64: 16, 32>}, {pipeline_mode = #tpu.pipeline_mode<synchronous>, transform_indices = @transform_4, window_bounds = array<i64: 64, 8>}, {pipeline_mode = #tpu.pipeline_mode<synchronous>, transform_indices = @transform_5, window_bounds = array<i64: 32, 64>}, {pipeline_mode = #tpu.pipeline_mode<synchronous>, transform_indices = @transform_6, window_bounds = array<i64: 208, 1>}, {transform_indices = @transform_7, window_bounds = array<i64: 48, 128>}]} {
    %c0 = arith.constant 0 : index
    %c0_0 = arith.constant 0 : index
    %0 = vector.load %arg1[%c0, %c0_0] : memref<40x128xf32, #tpu.memory_space<vmem>>, vector<32x128xf32>
    %c32 = arith.constant 32 : index
    %c0_1 = arith.constant 0 : index
    %1 = vector.load %arg1[%c32, %c0_1] : memref<40x128xf32, #tpu.memory_space<vmem>>, vector<8x128xf32>
    %c0_2 = arith.constant 0 : index
    %c0_3 = arith.constant 0 : index
    %2 = vector.load %arg7[%c0_2, %c0_3] : memref<208x1xf32, #tpu.memory_space<vmem>>, vector<64x1xf32>
    %c64 = arith.constant 64 : index
    %c0_4 = arith.constant 0 : index
    %3 = vector.load %arg7[%c64, %c0_4] : memref<208x1xf32, #tpu.memory_space<vmem>>, vector<32x1xf32>
    %c96 = arith.constant 96 : index
    %c0_5 = arith.constant 0 : index
    %4 = vector.load %arg7[%c96, %c0_5] : memref<208x1xf32, #tpu.memory_space<vmem>>, vector<16x1xf32>
    %c112 = arith.constant 112 : index
    %c0_6 = arith.constant 0 : index
    %5 = vector.load %arg7[%c112, %c0_6] : memref<208x1xf32, #tpu.memory_space<vmem>>, vector<64x1xf32>
    %c176 = arith.constant 176 : index
    %c0_7 = arith.constant 0 : index
    %6 = vector.load %arg7[%c176, %c0_7] : memref<208x1xf32, #tpu.memory_space<vmem>>, vector<32x1xf32>
    %c0_8 = arith.constant 0 : index
    %c0_9 = arith.constant 0 : index
    %7 = vector.load %arg2[%c0_8, %c0_9] : memref<64x32xf32, #tpu.memory_space<vmem>>, vector<64x32xf32>
    %cst = arith.constant dense<0.000000e+00> : vector<64x128xf32>
    %8 = tpu.matmul %7, %0, %cst {dimension_numbers = #tpu.dot_dimension_numbers<[1], [0], [0], [1], [0, 0, 1, 1], [], []>} : vector<64x32xf32>, vector<32x128xf32>, vector<64x128xf32> -> vector<64x128xf32>
    %9 = vector.broadcast %2 : vector<64x1xf32> to vector<64x128xf32>
    %10 = arith.addf %8, %9 : vector<64x128xf32>
    %cst_10 = arith.constant 0.000000e+00 : f32
    %11 = vector.broadcast %cst_10 : f32 to vector<64x128xf32>
    %12 = arith.cmpf ogt, %10, %11 : vector<64x128xf32>
    %cst_11 = arith.constant 2.000000e-01 : f32
    %13 = vector.broadcast %cst_11 : f32 to vector<64x128xf32>
    %14 = arith.mulf %13, %10 : vector<64x128xf32>
    %15 = arith.select %12, %10, %14 : vector<64x128xi1>, vector<64x128xf32>
    %c0_12 = arith.constant 0 : index
    %c0_13 = arith.constant 0 : index
    %16 = vector.load %arg3[%c0_12, %c0_13] : memref<32x64xf32, #tpu.memory_space<vmem>>, vector<32x64xf32>
    %cst_14 = arith.constant dense<0.000000e+00> : vector<32x128xf32>
    %17 = tpu.matmul %16, %15, %cst_14 {dimension_numbers = #tpu.dot_dimension_numbers<[1], [0], [0], [1], [0, 0, 1, 1], [], []>} : vector<32x64xf32>, vector<64x128xf32>, vector<32x128xf32> -> vector<32x128xf32>
    %18 = vector.broadcast %3 : vector<32x1xf32> to vector<32x128xf32>
    %19 = arith.addf %17, %18 : vector<32x128xf32>
    %cst_15 = arith.constant 0.000000e+00 : f32
    %20 = vector.broadcast %cst_15 : f32 to vector<32x128xf32>
    %21 = arith.cmpf ogt, %19, %20 : vector<32x128xf32>
    %cst_16 = arith.constant 2.000000e-01 : f32
    %22 = vector.broadcast %cst_16 : f32 to vector<32x128xf32>
    %23 = arith.mulf %22, %19 : vector<32x128xf32>
    %24 = arith.select %21, %19, %23 : vector<32x128xi1>, vector<32x128xf32>
    %c0_17 = arith.constant 0 : index
    %c0_18 = arith.constant 0 : index
    %25 = vector.load %arg4[%c0_17, %c0_18] : memref<16x32xf32, #tpu.memory_space<vmem>>, vector<16x32xf32>
    %cst_19 = arith.constant dense<0.000000e+00> : vector<16x128xf32>
    %26 = tpu.matmul %25, %24, %cst_19 {dimension_numbers = #tpu.dot_dimension_numbers<[1], [0], [0], [1], [0, 0, 1, 1], [], []>} : vector<16x32xf32>, vector<32x128xf32>, vector<16x128xf32> -> vector<16x128xf32>
    %27 = vector.broadcast %4 : vector<16x1xf32> to vector<16x128xf32>
    %28 = arith.addf %26, %27 : vector<16x128xf32>
    %29 = vector.extract_strided_slice %28 {offsets = [0, 0], sizes = [8, 128], strides = [1, 1]} : vector<16x128xf32> to vector<8x128xf32>
    %30 = vector.extract_strided_slice %28 {offsets = [8, 0], sizes = [8, 128], strides = [1, 1]} : vector<16x128xf32> to vector<8x128xf32>
    %31 = math.exp %30 : vector<8x128xf32>
    %32 = arith.mulf %1, %31 : vector<8x128xf32>
    %33 = arith.addf %29, %32 : vector<8x128xf32>
    %c0_20 = arith.constant 0 : index
    %c0_21 = arith.constant 0 : index
    %34 = vector.load %arg5[%c0_20, %c0_21] : memref<64x8xf32, #tpu.memory_space<vmem>>, vector<64x8xf32>
    %cst_22 = arith.constant dense<0.000000e+00> : vector<64x128xf32>
    %35 = tpu.matmul %34, %33, %cst_22 {dimension_numbers = #tpu.dot_dimension_numbers<[1], [0], [0], [1], [0, 0, 1, 1], [], []>} : vector<64x8xf32>, vector<8x128xf32>, vector<64x128xf32> -> vector<64x128xf32>
    %36 = vector.broadcast %5 : vector<64x1xf32> to vector<64x128xf32>
    %37 = arith.addf %35, %36 : vector<64x128xf32>
    %cst_23 = arith.constant 0.000000e+00 : f32
    %38 = vector.broadcast %cst_23 : f32 to vector<64x128xf32>
    %39 = arith.maximumf %37, %38 : vector<64x128xf32>
    %c0_24 = arith.constant 0 : index
    %c0_25 = arith.constant 0 : index
    %40 = vector.load %arg6[%c0_24, %c0_25] : memref<32x64xf32, #tpu.memory_space<vmem>>, vector<32x64xf32>
    %cst_26 = arith.constant dense<0.000000e+00> : vector<32x128xf32>
    %41 = tpu.matmul %40, %39, %cst_26 {dimension_numbers = #tpu.dot_dimension_numbers<[1], [0], [0], [1], [0, 0, 1, 1], [], []>} : vector<32x64xf32>, vector<64x128xf32>, vector<32x128xf32> -> vector<32x128xf32>
    %42 = vector.broadcast %6 : vector<32x1xf32> to vector<32x128xf32>
    %43 = arith.addf %41, %42 : vector<32x128xf32>
    %c0_27 = arith.constant 0 : index
    %c0_28 = arith.constant 0 : index
    %44 = vector.load %arg8[%c0_27, %c0_28] : memref<48x128xf32, #tpu.memory_space<vmem>>, vector<32x128xf32>
    tpu.vector_store %arg8[%c0_27, %c0_28], %43 {strides = array<i32>} : memref<48x128xf32, #tpu.memory_space<vmem>>, vector<32x128xf32>,
    %c32_29 = arith.constant 32 : index
    %c0_30 = arith.constant 0 : index
    %45 = vector.load %arg8[%c32_29, %c0_30] : memref<48x128xf32, #tpu.memory_space<vmem>>, vector<8x128xf32>
    tpu.vector_store %arg8[%c32_29, %c0_30], %29 {strides = array<i32>} : memref<48x128xf32, #tpu.memory_space<vmem>>, vector<8x128xf32>,
    %c40 = arith.constant 40 : index
    %c0_31 = arith.constant 0 : index
    %46 = vector.load %arg8[%c40, %c0_31] : memref<48x128xf32, #tpu.memory_space<vmem>>, vector<8x128xf32>
    tpu.vector_store %arg8[%c40, %c0_31], %30 {strides = array<i32>} : memref<48x128xf32, #tpu.memory_space<vmem>>, vector<8x128xf32>,
    return
  }
  func.func @transform_0(%arg0: i32) -> (i32, i32) {
    %c0_i32 = arith.constant 0 : i32
    %c0_i32_0 = arith.constant 0 : i32
    return %c0_i32, %arg0 : i32, i32
  }
  func.func @transform_1(%arg0: i32) -> (i32, i32) {
    %c0_i32 = arith.constant 0 : i32
    %c0_i32_0 = arith.constant 0 : i32
    %c0_i32_1 = arith.constant 0 : i32
    return %c0_i32, %c0_i32_0 : i32, i32
  }
  func.func @transform_2(%arg0: i32) -> (i32, i32) {
    %c0_i32 = arith.constant 0 : i32
    %c0_i32_0 = arith.constant 0 : i32
    %c0_i32_1 = arith.constant 0 : i32
    return %c0_i32, %c0_i32_0 : i32, i32
  }
  func.func @transform_3(%arg0: i32) -> (i32, i32) {
    %c0_i32 = arith.constant 0 : i32
    %c0_i32_0 = arith.constant 0 : i32
    %c0_i32_1 = arith.constant 0 : i32
    return %c0_i32, %c0_i32_0 : i32, i32
  }
  func.func @transform_4(%arg0: i32) -> (i32, i32) {
    %c0_i32 = arith.constant 0 : i32
    %c0_i32_0 = arith.constant 0 : i32
    %c0_i32_1 = arith.constant 0 : i32
    return %c0_i32, %c0_i32_0 : i32, i32
  }
  func.func @transform_5(%arg0: i32) -> (i32, i32) {
    %c0_i32 = arith.constant 0 : i32
    %c0_i32_0 = arith.constant 0 : i32
    %c0_i32_1 = arith.constant 0 : i32
    return %c0_i32, %c0_i32_0 : i32, i32
  }
  func.func @transform_6(%arg0: i32) -> (i32, i32) {
    %c0_i32 = arith.constant 0 : i32
    %c0_i32_0 = arith.constant 0 : i32
    %c0_i32_1 = arith.constant 0 : i32
    return %c0_i32, %c0_i32_0 : i32, i32
  }
  func.func @transform_7(%arg0: i32) -> (i32, i32) {
    %c0_i32 = arith.constant 0 : i32
    %c0_i32_0 = arith.constant 0 : i32
    return %c0_i32, %arg0 : i32, i32
  }
}

</mosaic_0001>

<llo_original>
// kernel: tpu_custom_call.1
$region0: #{tpu_custom_call.1}
  #allocation0 [shape = 'u32[]', space=smem, size = 0x4, offset = 0x4, fixed_abs, tag = 'smem constant byte address 0x4 - core index']
  #allocation1 [shape = 'u32[144,128]{1,0:T(1,128)}', space=vmem, size = 0x12000, scoped, tag = 'internal scratch']
  %s0 = inlined_call_operand.vmem [shape: f32[40,256], index: 0, kind: input, shape index: {}]
  %s1 = inlined_call_operand.vmem [shape: f32[64,32], index: 1, kind: input, shape index: {}]
  %s2 = inlined_call_operand.vmem [shape: f32[32,64], index: 2, kind: input, shape index: {}]
  %s3 = inlined_call_operand.vmem [shape: f32[16,32], index: 3, kind: input, shape index: {}]
  %s4 = inlined_call_operand.vmem [shape: f32[64,8], index: 4, kind: input, shape index: {}]
  %s5 = inlined_call_operand.vmem [shape: f32[32,64], index: 5, kind: input, shape index: {}]
  %s6 = inlined_call_operand.vmem [shape: f32[208,1], index: 6, kind: input, shape index: {}]
  %s7 = inlined_call_operand.hbm [shape: f32[48,256], index: 7, kind: output, shape index: {}]
  %s8 = sld [smem:[#allocation0]]
  $region99: #{tpu_custom_call.1} parent=0
    _
  %s10 = ssub.s32 1, %s8
  %s11 = scalar_select 0, %s10, %s8
  $region1: #{tpu_custom_call.1} parent=0
    #allocation2 [shape = 'u8[40960]{0}', space=vmem, size = 0xa000, scoped, tag = 'input window, operand 0']
    #allocation3 [shape = 'u8[49152]{0}', space=vmem, size = 0xc000, scoped, tag = 'output window, operand 0']
    #allocation4 [shape = 's32[2]{0}', space=sflag, size = 0x8, scoped, tag = 'scoped memory for tpu_custom_call.1']
    %12 = vsyncpa [#allocation4], 0
    %s13 = scalar_lea.sflag [#allocation4], 1
    %14 = vsyncpa %s13, 0
    loop: start=0, step=1, limit=4
    $region2: #{tpu_custom_call.1} parent=1 // loop_pre_header
      _
    $region3: #{tpu_custom_call.1} parent=1 // loop_header
      %s16 = sphi 0, %s20
      %p17 = scmp.ge.s32.totalorder %s16, 4
      %s26 = sphi 0, %s28
      %s29 = sphi 0, %s26
      %s30 = sphi 0, %s29
      %s46 = sphi 0, %s30
      %s50 = sphi 0, %s50
      %s52 = sphi 0, %s50
      %s53 = sphi 0, %s52
      %s67 = sphi 0, %s53
      %s71 = sphi 0, %s71
      %s73 = sphi 0, %s71
      %s74 = sphi 0, %s73
      %s88 = sphi 0, %s74
      %s92 = sphi 0, %s92
      %s94 = sphi 0, %s92
      %s95 = sphi 0, %s94
      %s109 = sphi 0, %s95
      %s113 = sphi 0, %s113
      %s115 = sphi 0, %s113
      %s116 = sphi 0, %s115
      %s130 = sphi 0, %s116
      %s134 = sphi 0, %s134
      %s136 = sphi 0, %s134
      %s137 = sphi 0, %s136
      %s151 = sphi 0, %s137
      %s155 = sphi 0, %s155
      %s157 = sphi 0, %s155
      %s158 = sphi 0, %s157
      %s172 = sphi 0, %s158
      %s178 = sphi 0, %s180
      %s181 = sphi 0, %s178
      %s182 = sphi 0, %s181
      %s198 = sphi 0, %s182
    $region4: #{tpu_custom_call.1} parent=1 // loop_header_branch
      %19 = sbr.rel (%p17) target = $region8
    $region5: #{tpu_custom_call.1} parent=1 // loop_body
      %s21 = ssub.s32 %s16, 1
      %s22 = ssub.s32 %s16, 2
      %s23 = sadd.s32 %s16, 1
      %s24 = ssub.s32 %s16, %s23
      %p25 = scmp.eq.s32.totalorder %s24, 0
      %s27 = sadd.s32 %s26, 1
      %s28 = scalar_select %p25, %s26, %s27
      %p31 = pneg %p25
      %p32 = scmp.eq.s32.totalorder %s16, 1
      %p33 = por %p31, %p32
      %p34 = scmp.ne.s32.totalorder %s26, %s29
      %p35 = scmp.eq.s32.totalorder %s16, 0
      %p36 = por %p34, %p35
      %p37 = scmp.ne.s32.totalorder %s26, %s29
      %p38 = scmp.eq.s32.totalorder %s21, 1
      %p39 = por %p37, %p38
      %p40 = scmp.ne.s32.totalorder %s29, %s30
      %p41 = scmp.eq.s32.totalorder %s21, 0
      %p42 = por %p40, %p41
      %p43 = scmp.ne.s32.totalorder %s29, %s30
      %p44 = scmp.eq.s32.totalorder %s22, 1
      %p45 = por %p43, %p44
      %p47 = scmp.ne.s32.totalorder %s30, %s46
      %p48 = scmp.eq.s32.totalorder %s22, 0
      %p49 = por %p47, %p48
      %s51 = sadd.s32 %s50, 1
      %p54 = scmp.eq.s32.totalorder %s16, 1
      %p55 = scmp.ne.s32.totalorder %s50, %s52
      %p56 = scmp.eq.s32.totalorder %s16, 0
      %p57 = por %p55, %p56
      %p58 = scmp.ne.s32.totalorder %s50, %s52
      %p59 = scmp.eq.s32.totalorder %s21, 1
      %p60 = por %p58, %p59
      %p61 = scmp.ne.s32.totalorder %s52, %s53
      %p62 = scmp.eq.s32.totalorder %s21, 0
      %p63 = por %p61, %p62
      %p64 = scmp.ne.s32.totalorder %s52, %s53
      %p65 = scmp.eq.s32.totalorder %s22, 1
      %p66 = por %p64, %p65
      %p68 = scmp.ne.s32.totalorder %s53, %s67
      %p69 = scmp.eq.s32.totalorder %s22, 0
      %p70 = por %p68, %p69
      %s72 = sadd.s32 %s71, 1
      %p75 = scmp.eq.s32.totalorder %s16, 1
      %p76 = scmp.ne.s32.totalorder %s71, %s73
      %p77 = scmp.eq.s32.totalorder %s16, 0
      %p78 = por %p76, %p77
      %p79 = scmp.ne.s32.totalorder %s71, %s73
      %p80 = scmp.eq.s32.totalorder %s21, 1
      %p81 = por %p79, %p80
      %p82 = scmp.ne.s32.totalorder %s73, %s74
      %p83 = scmp.eq.s32.totalorder %s21, 0
      %p84 = por %p82, %p83
      %p85 = scmp.ne.s32.totalorder %s73, %s74
      %p86 = scmp.eq.s32.totalorder %s22, 1
      %p87 = por %p85, %p86
      %p89 = scmp.ne.s32.totalorder %s74, %s88
      %p90 = scmp.eq.s32.totalorder %s22, 0
      %p91 = por %p89, %p90
      %s93 = sadd.s32 %s92, 1
      %p96 = scmp.eq.s32.totalorder %s16, 1
      %p97 = scmp.ne.s32.totalorder %s92, %s94
      %p98 = scmp.eq.s32.totalorder %s16, 0
      %p99 = por %p97, %p98
      %p100 = scmp.ne.s32.totalorder %s92, %s94
      %p101 = scmp.eq.s32.totalorder %s21, 1
      %p102 = por %p100, %p101
      %p103 = scmp.ne.s32.totalorder %s94, %s95
      %p104 = scmp.eq.s32.totalorder %s21, 0
      %p105 = por %p103, %p104
      %p106 = scmp.ne.s32.totalorder %s94, %s95
      %p107 = scmp.eq.s32.totalorder %s22, 1
      %p108 = por %p106, %p107
      %p110 = scmp.ne.s32.totalorder %s95, %s109
      %p111 = scmp.eq.s32.totalorder %s22, 0
      %p112 = por %p110, %p111
      %s114 = sadd.s32 %s113, 1
      %p117 = scmp.eq.s32.totalorder %s16, 1
      %p118 = scmp.ne.s32.totalorder %s113, %s115
      %p119 = scmp.eq.s32.totalorder %s16, 0
      %p120 = por %p118, %p119
      %p121 = scmp.ne.s32.totalorder %s113, %s115
      %p122 = scmp.eq.s32.totalorder %s21, 1
      %p123 = por %p121, %p122
      %p124 = scmp.ne.s32.totalorder %s115, %s116
      %p125 = scmp.eq.s32.totalorder %s21, 0
      %p126 = por %p124, %p125
      %p127 = scmp.ne.s32.totalorder %s115, %s116
      %p128 = scmp.eq.s32.totalorder %s22, 1
      %p129 = por %p127, %p128
      %p131 = scmp.ne.s32.totalorder %s116, %s130
      %p132 = scmp.eq.s32.totalorder %s22, 0
      %p133 = por %p131, %p132
      %s135 = sadd.s32 %s134, 1
      %p138 = scmp.eq.s32.totalorder %s16, 1
      %p139 = scmp.ne.s32.totalorder %s134, %s136
      %p140 = scmp.eq.s32.totalorder %s16, 0
      %p141 = por %p139, %p140
      %p142 = scmp.ne.s32.totalorder %s134, %s136
      %p143 = scmp.eq.s32.totalorder %s21, 1
      %p144 = por %p142, %p143
      %p145 = scmp.ne.s32.totalorder %s136, %s137
      %p146 = scmp.eq.s32.totalorder %s21, 0
      %p147 = por %p145, %p146
      %p148 = scmp.ne.s32.totalorder %s136, %s137
      %p149 = scmp.eq.s32.totalorder %s22, 1
      %p150 = por %p148, %p149
      %p152 = scmp.ne.s32.totalorder %s137, %s151
      %p153 = scmp.eq.s32.totalorder %s22, 0
      %p154 = por %p152, %p153
      %s156 = sadd.s32 %s155, 1
      %p159 = scmp.eq.s32.totalorder %s16, 1
      %p160 = scmp.ne.s32.totalorder %s155, %s157
      %p161 = scmp.eq.s32.totalorder %s16, 0
      %p162 = por %p160, %p161
      %p163 = scmp.ne.s32.totalorder %s155, %s157
      %p164 = scmp.eq.s32.totalorder %s21, 1
      %p165 = por %p163, %p164
      %p166 = scmp.ne.s32.totalorder %s157, %s158
      %p167 = scmp.eq.s32.totalorder %s21, 0
      %p168 = por %p166, %p167
      %p169 = scmp.ne.s32.totalorder %s157, %s158
      %p170 = scmp.eq.s32.totalorder %s22, 1
      %p171 = por %p169, %p170
      %p173 = scmp.ne.s32.totalorder %s158, %s172
      %p174 = scmp.eq.s32.totalorder %s22, 0
      %p175 = por %p173, %p174
      %s176 = ssub.s32 %s16, %s23
      %p177 = scmp.eq.s32.totalorder %s176, 0
      %s179 = sadd.s32 %s178, 1
      %s180 = scalar_select %p177, %s178, %s179
      %p183 = pneg %p177
      %p184 = scmp.eq.s32.totalorder %s16, 1
      %p185 = por %p183, %p184
      %p186 = scmp.ne.s32.totalorder %s178, %s181
      %p187 = scmp.eq.s32.totalorder %s16, 0
      %p188 = por %p186, %p187
      %p189 = scmp.ne.s32.totalorder %s178, %s181
      %p190 = scmp.eq.s32.totalorder %s21, 1
      %p191 = por %p189, %p190
      %p192 = scmp.ne.s32.totalorder %s181, %s182
      %p193 = scmp.eq.s32.totalorder %s21, 0
      %p194 = por %p192, %p193
      %p195 = scmp.ne.s32.totalorder %s181, %s182
      %p196 = scmp.eq.s32.totalorder %s22, 1
      %p197 = por %p195, %p196
      %p199 = scmp.ne.s32.totalorder %s182, %s198
      %p200 = scmp.eq.s32.totalorder %s22, 0
      %p201 = por %p199, %p200
      %p202 = scmp.le.s32.totalorder 1, %s16
      %p203 = scmp.lt.s32.totalorder %s16, 3
      %p204 = pnand %p202, %p203
      %p205 = pneg %p204
      // Predicated region
      $region9: #{tpu_custom_call.1} parent=5 // pred_check
        _
      $region10: #{tpu_custom_call.1} parent=5 // pred_check_branch
        %207 = sbr.rel (%p204) target = $region12
      $region11: #{tpu_custom_call.1} parent=5 // pred_region
        %s208 = ssub.s32 %s16, 1
        // Predicated region
        $region13: #{tpu_custom_call.1} parent=11 // pred_check
          %p209 = pneg %p63
        $region14: #{tpu_custom_call.1} parent=11 // pred_check_branch
          %211 = sbr.rel (%p209) target = $region16
        $region15: #{tpu_custom_call.1} parent=11 // pred_region
          _
        $region16: #{tpu_custom_call.1} parent=11 // pred_fallthru
          _
        // Predicated region
        $region17: #{tpu_custom_call.1} parent=11 // pred_check
          %p212 = pneg %p84
        $region18: #{tpu_custom_call.1} parent=11 // pred_check_branch
          %214 = sbr.rel (%p212) target = $region20
        $region19: #{tpu_custom_call.1} parent=11 // pred_region
          _
        $region20: #{tpu_custom_call.1} parent=11 // pred_fallthru
          _
        // Predicated region
        $region21: #{tpu_custom_call.1} parent=11 // pred_check
          %p215 = pneg %p105
        $region22: #{tpu_custom_call.1} parent=11 // pred_check_branch
          %217 = sbr.rel (%p215) target = $region24
        $region23: #{tpu_custom_call.1} parent=11 // pred_region
          _
        $region24: #{tpu_custom_call.1} parent=11 // pred_fallthru
          _
        // Predicated region
        $region25: #{tpu_custom_call.1} parent=11 // pred_check
          %p218 = pneg %p126
        $region26: #{tpu_custom_call.1} parent=11 // pred_check_branch
          %220 = sbr.rel (%p218) target = $region28
        $region27: #{tpu_custom_call.1} parent=11 // pred_region
          _
        $region28: #{tpu_custom_call.1} parent=11 // pred_fallthru
          _
        // Predicated region
        $region29: #{tpu_custom_call.1} parent=11 // pred_check
          %p221 = pneg %p147
        $region30: #{tpu_custom_call.1} parent=11 // pred_check_branch
          %223 = sbr.rel (%p221) target = $region32
        $region31: #{tpu_custom_call.1} parent=11 // pred_region
          _
        $region32: #{tpu_custom_call.1} parent=11 // pred_fallthru
          _
        // Predicated region
        $region33: #{tpu_custom_call.1} parent=11 // pred_check
          %p224 = pneg %p168
        $region34: #{tpu_custom_call.1} parent=11 // pred_check_branch
          %226 = sbr.rel (%p224) target = $region36
        $region35: #{tpu_custom_call.1} parent=11 // pred_region
          _
        $region36: #{tpu_custom_call.1} parent=11 // pred_fallthru
          _
      $region12: #{tpu_custom_call.1} parent=5 // pred_fallthru
        _
      %p227 = scmp.lt.s32.totalorder %s16, 2
      // Predicated region
      $region37: #{tpu_custom_call.1} parent=5 // pred_check
        %p228 = pneg %p227
      $region38: #{tpu_custom_call.1} parent=5 // pred_check_branch
        %230 = sbr.rel (%p228) target = $region40
      $region39: #{tpu_custom_call.1} parent=5 // pred_region
        // Predicated region
        $region41: #{tpu_custom_call.1} parent=39 // pred_check
          %p231 = pneg %p36
        $region42: #{tpu_custom_call.1} parent=39 // pred_check_branch
          %233 = sbr.rel (%p231) target = $region44
        $region43: #{tpu_custom_call.1} parent=39 // pred_region
          %s234 = sand.u32 %s26, 1
          %s235 = sand.u32 %s26, 1
          %s236 = smul.addr %s235, 40
          %s237 = scalar_lea.vmem [#allocation2], %s236
          %s238 = smul.addr %s16, 8
          %s239 = scalar_lea.vmem %s0, %s238
          // Predicated region
          $region45: #{tpu_custom_call.1} parent=43 // pred_check
            _
          $region46: #{tpu_custom_call.1} parent=43 // pred_check_branch
            %241 = sbr.rel (0) target = $region48
          $region47: #{tpu_custom_call.1} parent=43 // pred_region
            // Predicated region
            $region49: #{tpu_custom_call.1} parent=47 // pred_check
              _
            $region50: #{tpu_custom_call.1} parent=47 // pred_check_branch
              %243 = sbr.rel (0) target = $region52
            $region51: #{tpu_custom_call.1} parent=47 // pred_region
              // Predicated region
              $region64: #{tpu_custom_call.1} parent=51 // pred_check
                _
              $region65: #{tpu_custom_call.1} parent=51 // pred_check_branch
                %266 = sbr.rel (0) target = $region67
              $region66: #{tpu_custom_call.1} parent=51 // pred_region
                loop: start=0, step=1, limit=1
                $region68: #{tpu_custom_call.1} parent=66 // loop_pre_header
                  _
                $region69: #{tpu_custom_call.1} parent=66 // loop_header
                  %s268 = sphi 0, %s272
                  %p269 = scmp.ge.s32.totalorder %s268, 1
                  %s273 = sphi %s239, %s239
                  %s274 = sphi %s237, %s237
                $region70: #{tpu_custom_call.1} parent=66 // loop_header_branch
                  %271 = sbr.rel (%p269) target = $region74
                $region71: #{tpu_custom_call.1} parent=66 // loop_body
                  %v275 = vld [vmem:[%s273] sm:$0xff]
                  %276 = vst [vmem:[%s274] sm:$0xff] %v275
                  %v277 = vld [vmem:[%s273 + $0x10] sm:$0xff]
                  %278 = vst [vmem:[%s274 + $0x8] sm:$0xff] %v277
                  %v279 = vld [vmem:[%s273 + $0x20] sm:$0xff]
                  %280 = vst [vmem:[%s274 + $0x10] sm:$0xff] %v279
                  %v281 = vld [vmem:[%s273 + $0x30] sm:$0xff]
                  %282 = vst [vmem:[%s274 + $0x18] sm:$0xff] %v281
                  %v283 = vld [vmem:[%s273 + $0x40] sm:$0xff]
                  %284 = vst [vmem:[%s274 + $0x20] sm:$0xff] %v283
                $region72: #{tpu_custom_call.1} parent=66 // loop_footer
                  %s272 = sadd.s32 1, %s268
                $region73: #{tpu_custom_call.1} parent=66 // loop_footer_branch
                  %267 = sbr.rel target = $region69
                $region74: #{tpu_custom_call.1} parent=66 // loop_exit
                  _
              $region67: #{tpu_custom_call.1} parent=51 // pred_fallthru
                _
              // Predicated region
              $region75: #{tpu_custom_call.1} parent=51 // pred_check
                _
              $region76: #{tpu_custom_call.1} parent=51 // pred_check_branch
                %286 = sbr.rel target = $region78
              $region77: #{tpu_custom_call.1} parent=51 // pred_region
                _
              $region78: #{tpu_custom_call.1} parent=51 // pred_fallthru
                _
            $region52: #{tpu_custom_call.1} parent=47 // pred_fallthru
              _
            // Predicated region
            $region53: #{tpu_custom_call.1} parent=47 // pred_check
              _
            $region54: #{tpu_custom_call.1} parent=47 // pred_check_branch
              %245 = sbr.rel target = $region56
            $region55: #{tpu_custom_call.1} parent=47 // pred_region
              loop: start=0, step=1, limit=1
              $region57: #{tpu_custom_call.1} parent=55 // loop_pre_header
                _
              $region58: #{tpu_custom_call.1} parent=55 // loop_header
                %s248 = sphi 0, %s252
                %p249 = scmp.ge.s32.totalorder %s248, 1
                %s253 = sphi %s239, %s239
                %s254 = sphi %s237, %s237
              $region59: #{tpu_custom_call.1} parent=55 // loop_header_branch
                %251 = sbr.rel (%p249) target = $region63
              $region60: #{tpu_custom_call.1} parent=55 // loop_body
                %v255 = vld [vmem:[%s253] sm:$0xff]
                %256 = vst [vmem:[%s254] sm:$0xff] %v255
                %v257 = vld [vmem:[%s253 + $0x10] sm:$0xff]
                %258 = vst [vmem:[%s254 + $0x8] sm:$0xff] %v257
                %v259 = vld [vmem:[%s253 + $0x20] sm:$0xff]
                %260 = vst [vmem:[%s254 + $0x10] sm:$0xff] %v259
                %v261 = vld [vmem:[%s253 + $0x30] sm:$0xff]
                %262 = vst [vmem:[%s254 + $0x18] sm:$0xff] %v261
                %v263 = vld [vmem:[%s253 + $0x40] sm:$0xff]
                %264 = vst [vmem:[%s254 + $0x20] sm:$0xff] %v263
              $region61: #{tpu_custom_call.1} parent=55 // loop_footer
                %s252 = sadd.s32 1, %s248
              $region62: #{tpu_custom_call.1} parent=55 // loop_footer_branch
                %247 = sbr.rel target = $region58
              $region63: #{tpu_custom_call.1} parent=55 // loop_exit
                _
            $region56: #{tpu_custom_call.1} parent=47 // pred_fallthru
              _
          $region48: #{tpu_custom_call.1} parent=43 // pred_fallthru
            _
          %287 = vnop
        $region44: #{tpu_custom_call.1} parent=39 // pred_fallthru
          _
      $region40: #{tpu_custom_call.1} parent=5 // pred_fallthru
        _
      %p288 = scmp.le.s32.totalorder 1, %s16
      %p289 = scmp.lt.s32.totalorder %s16, 3
      %p290 = pnand %p288, %p289
      %p291 = pneg %p290
      // Predicated region
      $region79: #{tpu_custom_call.1} parent=5 // pred_check
        _
      $region80: #{tpu_custom_call.1} parent=5 // pred_check_branch
        %293 = sbr.rel (%p290) target = $region82
      $region81: #{tpu_custom_call.1} parent=5 // pred_region
        %s294 = ssub.s32 %s16, 1
        %s295 = sand.u32 %s29, 1
        %s296 = sand.u32 %s29, 1
        %s297 = smul.addr %s296, 40
        %s298 = scalar_lea.vmem [#allocation2], %s297
        // Predicated region
        $region83: #{tpu_custom_call.1} parent=81 // pred_check
          %p299 = pneg %p42
        $region84: #{tpu_custom_call.1} parent=81 // pred_check_branch
          %301 = sbr.rel (%p299) target = $region86
        $region85: #{tpu_custom_call.1} parent=81 // pred_region
          _
        $region86: #{tpu_custom_call.1} parent=81 // pred_fallthru
          _
        %s302 = sand.u32 %s29, 1
        %s303 = sand.u32 %s29, 1
        %s304 = smul.addr %s303, 40
        %s305 = scalar_lea.vmem [#allocation2], %s304
        %p306 = pneg %p42
        %p307 = pneg %p39
        %p308 = pneg %p63
        %p309 = pneg %p60
        %p310 = pneg %p84
        %p311 = pneg %p81
        %p312 = pneg %p105
        %p313 = pneg %p102
        %p314 = pneg %p126
        %p315 = pneg %p123
        %p316 = pneg %p147
        %p317 = pneg %p144
        %p318 = pneg %p168
        %p319 = pneg %p165
        %p320 = pneg %p194
        %p321 = pneg %p191
        %s322 = sand.u32 %s181, 1
        %s323 = scalar_lea.sflag [#allocation4], %s322
        %s324 = sand.u32 %s181, 1
        %s325 = smul.addr %s324, 48
        %s326 = scalar_lea.vmem [#allocation3], %s325
        %v327 = vld [vmem:[%s298] sm:$0xff]
        %v328 = vld [vmem:[%s298 + $0x8] sm:$0xff]
        %v329 = vld [vmem:[%s298 + $0x10] sm:$0xff]
        %v330 = vld [vmem:[%s298 + $0x18] sm:$0xff]
        %v331 = vld [vmem:[%s298 + $0x20] sm:$0xff]
        %v332 = vld [vmem:[%s6] sm:$0xff]
        %v333 = vld [vmem:[%s6 + $0x8] sm:$0xff]
        %v334 = vld [vmem:[%s6 + $0x10] sm:$0xff]
        %v335 = vld [vmem:[%s6 + $0x18] sm:$0xff]
        %v336 = vld [vmem:[%s6 + $0x20] sm:$0xff]
        %v337 = vld [vmem:[%s6 + $0x28] sm:$0xff]
        %v338 = vld [vmem:[%s6 + $0x30] sm:$0xff]
        %v339 = vld [vmem:[%s6 + $0x38] sm:$0xff]
        %v340 = vld [vmem:[%s6 + $0x40] sm:$0xff]
        %v341 = vld [vmem:[%s6 + $0x48] sm:$0xff]
        %v342 = vld [vmem:[%s6 + $0x50] sm:$0xff]
        %v343 = vld [vmem:[%s6 + $0x58] sm:$0xff]
        %v344 = vld [vmem:[%s6 + $0x60] sm:$0xff]
        %v345 = vld [vmem:[%s6 + $0x68] sm:$0xff]
        %v346 = vld [vmem:[%s6 + $0x70] sm:$0xff]
        %v347 = vld [vmem:[%s6 + $0x78] sm:$0xff]
        %v348 = vld [vmem:[%s6 + $0x80] sm:$0xff]
        %v349 = vld [vmem:[%s6 + $0x88] sm:$0xff]
        %v350 = vld [vmem:[%s6 + $0x90] sm:$0xff]
        %v351 = vld [vmem:[%s6 + $0x98] sm:$0xff]
        %v352 = vld [vmem:[%s6 + $0xa0] sm:$0xff]
        %v353 = vld [vmem:[%s6 + $0xa8] sm:$0xff]
        %v354 = vld [vmem:[%s6 + $0xb0] sm:$0xff]
        %v355 = vld [vmem:[%s6 + $0xb8] sm:$0xff]
        %v356 = vld [vmem:[%s6 + $0xc0] sm:$0xff]
        %v357 = vld [vmem:[%s6 + $0xc8] sm:$0xff]
        %v358 = vld [vmem:[%s1] sm:$0xff]
        %v359 = vld [vmem:[%s1 + $0x8] sm:$0xff]
        %v360 = vld [vmem:[%s1 + $0x10] sm:$0xff]
        %v361 = vld [vmem:[%s1 + $0x18] sm:$0xff]
        %v362 = vld [vmem:[%s1 + $0x20] sm:$0xff]
        %v363 = vld [vmem:[%s1 + $0x28] sm:$0xff]
        %v364 = vld [vmem:[%s1 + $0x30] sm:$0xff]
        %v365 = vld [vmem:[%s1 + $0x38] sm:$0xff]
        %367 = vset.pattern.permute.xlu0 0
        %368 = vperm.xlu0 %367, %v332
        %v369 = vpop.permute.xlu0 %368
        %372 = vset.pattern.permute.xlu0 0
        %373 = vperm.xlu0 %372, %v333
        %v374 = vpop.permute.xlu0 %373
        %377 = vset.pattern.permute.xlu0 0
        %378 = vperm.xlu0 %377, %v334
        %v379 = vpop.permute.xlu0 %378
        %382 = vset.pattern.permute.xlu0 0
        %383 = vperm.xlu0 %382, %v335
        %v384 = vpop.permute.xlu0 %383
        %387 = vset.pattern.permute.xlu0 0
        %388 = vperm.xlu0 %387, %v336
        %v389 = vpop.permute.xlu0 %388
        %392 = vset.pattern.permute.xlu0 0
        %393 = vperm.xlu0 %392, %v337
        %v394 = vpop.permute.xlu0 %393
        %397 = vset.pattern.permute.xlu0 0
        %398 = vperm.xlu0 %397, %v338
        %v399 = vpop.permute.xlu0 %398
        %402 = vset.pattern.permute.xlu0 0
        %403 = vperm.xlu0 %402, %v339
        %v404 = vpop.permute.xlu0 %403
        %vm406 = vcmask 261120
        %v408 = vsel %vm406, %v358, 0
        %v411 = vsel %vm406, %v359, 0
        %v414 = vsel %vm406, %v360, 0
        %v417 = vsel %vm406, %v361, 0
        %v420 = vsel %vm406, %v362, 0
        %v423 = vsel %vm406, %v363, 0
        %v426 = vsel %vm406, %v364, 0
        %v429 = vsel %vm406, %v365, 0
        %431 = vmatprep.subr.mxu0 0.0
        %432 = vmatpush1.msra.mxu0 %v327
        %433 = vmatprep.subr.mxu0 0.0
        %434 = vmatpush1.msra.mxu0 %v328
        %435 = vmatprep.subr.mxu0 0.0
        %436 = vmatpush1.msra.mxu0 %v329
        %437 = vmatprep.subr.mxu0 0.0
        %438 = vmatpush1.msra.mxu0 %v330
        %439 = vmatprep.subr.mxu0 0.0
        %440 = vmatpush1.msra.mxu0 0.0
        %441 = vmatprep.subr.mxu0 0.0
        %442 = vmatpush1.msra.mxu0 0.0
        %443 = vmatprep.subr.mxu0 0.0
        %444 = vmatpush1.msra.mxu0 0.0
        %445 = vmatprep.subr.mxu0 0.0
        %446 = vmatpush1.msra.mxu0 0.0
        %447 = vmatprep.subr.mxu0 0.0
        %448 = vmatpush1.msra.mxu0 0.0
        %449 = vmatprep.subr.mxu0 0.0
        %450 = vmatpush1.msra.mxu0 0.0
        %451 = vmatprep.subr.mxu0 0.0
        %452 = vmatpush1.msra.mxu0 0.0
        %453 = vmatprep.subr.mxu0 0.0
        %454 = vmatpush1.msra.mxu0 0.0
        %455 = vmatprep.subr.mxu0 0.0
        %456 = vmatpush1.msra.mxu0 0.0
        %457 = vmatprep.subr.mxu0 0.0
        %458 = vmatpush1.msra.mxu0 0.0
        %459 = vmatprep.subr.mxu0 0.0
        %460 = vmatpush1.msra.mxu0 0.0
        %461 = vmatprep.subr.mxu0 0.0
        %462 = vmatpush1.msra.mxu0 0.0
        %463 = vmatprep.subr.mxu0 0.0
        %464 = vmatpush1.msra.mxu0 0.0
        %465 = vmatprep.subr.mxu0 0.0
        %466 = vmatpush1.msra.mxu0 0.0
        %467 = vmatprep.subr.mxu0 0.0
        %468 = vmatpush1.msra.mxu0 0.0
        %469 = vmatprep.subr.mxu0 0.0
        %470 = vmatpush1.msra.mxu0 0.0
        %471 = vmatprep.subr.mxu0 0.0
        %472 = vmatpush1.msra.mxu0 0.0
        %473 = vmatprep.subr.mxu0 0.0
        %474 = vmatpush1.msra.mxu0 0.0
        %475 = vmatprep.subr.mxu0 0.0
        %476 = vmatpush1.msra.mxu0 0.0
        %477 = vmatprep.subr.mxu0 0.0
        %478 = vmatpush1.msra.mxu0 0.0
        %479 = vmatprep.subr.mxu0 0.0
        %480 = vmatpush1.msra.mxu0 0.0
        %481 = vmatprep.subr.mxu0 0.0
        %482 = vmatpush1.msra.mxu0 0.0
        %483 = vmatprep.subr.mxu0 0.0
        %484 = vmatpush1.msra.mxu0 0.0
        %485 = vmatprep.subr.mxu0 0.0
        %486 = vmatpush1.msra.mxu0 0.0
        %487 = vmatprep.subr.mxu0 0.0
        %488 = vmatpush1.msra.mxu0 0.0
        %489 = vmatprep.subr.mxu0 0.0
        %490 = vmatpush1.msra.mxu0 0.0
        %491 = vmatprep.subr.mxu0 0.0
        %492 = vmatpush1.msra.mxu0 0.0
        %493 = vmatprep.subr.mxu0 0.0
        %494 = vmatpush1.msra.mxu0 0.0
        %495 = vmatprep.mubr.f32.mxu0 0.0
        %496 = vmatmul.mubr.f32.gmra.mrb[0].mxu0 %v408
        %v497 = vpop.f32.mrb[0].mxu0
        %v498 = vadd.f32 %v369, %v497
        %v499 = vpop.f32.mrb[0].mxu0
        %500 = vmatprep.mubr.f32.mxu0 0.0
        %501 = vmatmul.mubr.f32.gmra.mrb[0].mxu0 %v411
        %v502 = vpop.f32.mrb[0].mxu0
        %v503 = vadd.f32 %v374, %v502
        %v504 = vpop.f32.mrb[0].mxu0
        %505 = vmatprep.mubr.f32.mxu0 0.0
        %506 = vmatmul.mubr.f32.gmra.mrb[0].mxu0 %v414
        %v507 = vpop.f32.mrb[0].mxu0
        %v508 = vadd.f32 %v379, %v507
        %v509 = vpop.f32.mrb[0].mxu0
        %510 = vmatprep.mubr.f32.mxu0 0.0
        %511 = vmatmul.mubr.f32.gmra.mrb[0].mxu0 %v417
        %v512 = vpop.f32.mrb[0].mxu0
        %v513 = vadd.f32 %v384, %v512
        %v514 = vpop.f32.mrb[0].mxu0
        %515 = vmatprep.mubr.f32.mxu0 0.0
        %516 = vmatmul.mubr.f32.gmra.mrb[0].mxu0 %v420
        %v517 = vpop.f32.mrb[0].mxu0
        %v518 = vadd.f32 %v389, %v517
        %v519 = vpop.f32.mrb[0].mxu0
        %520 = vmatprep.mubr.f32.mxu0 0.0
        %521 = vmatmul.mubr.f32.gmra.mrb[0].mxu0 %v423
        %v522 = vpop.f32.mrb[0].mxu0
        %v523 = vadd.f32 %v394, %v522
        %v524 = vpop.f32.mrb[0].mxu0
        %525 = vmatprep.mubr.f32.mxu0 0.0
        %526 = vmatmul.mubr.f32.gmra.mrb[0].mxu0 %v426
        %v527 = vpop.f32.mrb[0].mxu0
        %v528 = vadd.f32 %v399, %v527
        %v529 = vpop.f32.mrb[0].mxu0
        %530 = vmatprep.mubr.f32.mxu0 0.0
        %531 = vmatmul.mubr.f32.gmra.mrb[0].mxu0 %v429
        %v532 = vpop.f32.mrb[0].mxu0
        %v533 = vadd.f32 %v404, %v532
        %v534 = vpop.f32.mrb[0].mxu0
        %535 = vdwg.mxu0
        %vm536 = vcmp.gt.f32.partialorder %v498, 0.0
        %vm537 = vcmp.gt.f32.partialorder %v503, 0.0
        %vm538 = vcmp.gt.f32.partialorder %v508, 0.0
        %vm539 = vcmp.gt.f32.partialorder %v513, 0.0
        %vm540 = vcmp.gt.f32.partialorder %v518, 0.0
        %vm541 = vcmp.gt.f32.partialorder %v523, 0.0
        %vm542 = vcmp.gt.f32.partialorder %v528, 0.0
        %vm543 = vcmp.gt.f32.partialorder %v533, 0.0
        %v544 = vmul.f32 %v498, 0.2
        %v545 = vmul.f32 %v503, 0.2
        %v546 = vmul.f32 %v508, 0.2
        %v547 = vmul.f32 %v513, 0.2
        %v548 = vmul.f32 %v518, 0.2
        %v549 = vmul.f32 %v523, 0.2
        %v550 = vmul.f32 %v528, 0.2
        %v551 = vmul.f32 %v533, 0.2
        %v552 = vsel %vm536, %v498, %v544
        %v553 = vsel %vm537, %v503, %v545
        %v554 = vsel %vm538, %v508, %v546
        %v555 = vsel %vm539, %v513, %v547
        %v556 = vsel %vm540, %v518, %v548
        %v557 = vsel %vm541, %v523, %v549
        %v558 = vsel %vm542, %v528, %v550
        %v559 = vsel %vm543, %v533, %v551
        %v560 = vld [vmem:[%s2] sm:$0xff]
        %v561 = vld [vmem:[%s2 + $0x8] sm:$0xff]
        %v562 = vld [vmem:[%s2 + $0x10] sm:$0xff]
        %v563 = vld [vmem:[%s2 + $0x18] sm:$0xff]
        %565 = vset.pattern.permute.xlu0 0
        %566 = vperm.xlu0 %565, %v340
        %v567 = vpop.permute.xlu0 %566
        %570 = vset.pattern.permute.xlu0 0
        %571 = vperm.xlu0 %570, %v341
        %v572 = vpop.permute.xlu0 %571
        %575 = vset.pattern.permute.xlu0 0
        %576 = vperm.xlu0 %575, %v342
        %v577 = vpop.permute.xlu0 %576
        %580 = vset.pattern.permute.xlu0 0
        %581 = vperm.xlu0 %580, %v343
        %v582 = vpop.permute.xlu0 %581
        %vm584 = vcmask 523264
        %v586 = vsel %vm584, %v560, 0
        %v589 = vsel %vm584, %v561, 0
        %v592 = vsel %vm584, %v562, 0
        %v595 = vsel %vm584, %v563, 0
        %597 = vmatprep.subr.mxu0 0.0
        %598 = vmatpush1.msra.mxu0 %v552
        %599 = vmatprep.subr.mxu0 0.0
        %600 = vmatpush1.msra.mxu0 %v553
        %601 = vmatprep.subr.mxu0 0.0
        %602 = vmatpush1.msra.mxu0 %v554
        %603 = vmatprep.subr.mxu0 0.0
        %604 = vmatpush1.msra.mxu0 %v555
        %605 = vmatprep.subr.mxu0 0.0
        %606 = vmatpush1.msra.mxu0 %v556
        %607 = vmatprep.subr.mxu0 0.0
        %608 = vmatpush1.msra.mxu0 %v557
        %609 = vmatprep.subr.mxu0 0.0
        %610 = vmatpush1.msra.mxu0 %v558
        %611 = vmatprep.subr.mxu0 0.0
        %612 = vmatpush1.msra.mxu0 %v559
        %613 = vmatprep.subr.mxu0 0.0
        %614 = vmatpush1.msra.mxu0 0.0
        %615 = vmatprep.subr.mxu0 0.0
        %616 = vmatpush1.msra.mxu0 0.0
        %617 = vmatprep.subr.mxu0 0.0
        %618 = vmatpush1.msra.mxu0 0.0
        %619 = vmatprep.subr.mxu0 0.0
        %620 = vmatpush1.msra.mxu0 0.0
        %621 = vmatprep.subr.mxu0 0.0
        %622 = vmatpush1.msra.mxu0 0.0
        %623 = vmatprep.subr.mxu0 0.0
        %624 = vmatpush1.msra.mxu0 0.0
        %625 = vmatprep.subr.mxu0 0.0
        %626 = vmatpush1.msra.mxu0 0.0
        %627 = vmatprep.subr.mxu0 0.0
        %628 = vmatpush1.msra.mxu0 0.0
        %629 = vmatprep.subr.mxu0 0.0
        %630 = vmatpush1.msra.mxu0 0.0
        %631 = vmatprep.subr.mxu0 0.0
        %632 = vmatpush1.msra.mxu0 0.0
        %633 = vmatprep.subr.mxu0 0.0
        %634 = vmatpush1.msra.mxu0 0.0
        %635 = vmatprep.subr.mxu0 0.0
        %636 = vmatpush1.msra.mxu0 0.0
        %637 = vmatprep.subr.mxu0 0.0
        %638 = vmatpush1.msra.mxu0 0.0
        %639 = vmatprep.subr.mxu0 0.0
        %640 = vmatpush1.msra.mxu0 0.0
        %641 = vmatprep.subr.mxu0 0.0
        %642 = vmatpush1.msra.mxu0 0.0
        %643 = vmatprep.subr.mxu0 0.0
        %644 = vmatpush1.msra.mxu0 0.0
        %645 = vmatprep.subr.mxu0 0.0
        %646 = vmatpush1.msra.mxu0 0.0
        %647 = vmatprep.subr.mxu0 0.0
        %648 = vmatpush1.msra.mxu0 0.0
        %649 = vmatprep.subr.mxu0 0.0
        %650 = vmatpush1.msra.mxu0 0.0
        %651 = vmatprep.subr.mxu0 0.0
        %652 = vmatpush1.msra.mxu0 0.0
        %653 = vmatprep.subr.mxu0 0.0
        %654 = vmatpush1.msra.mxu0 0.0
        %655 = vmatprep.subr.mxu0 0.0
        %656 = vmatpush1.msra.mxu0 0.0
        %657 = vmatprep.subr.mxu0 0.0
        %658 = vmatpush1.msra.mxu0 0.0
        %659 = vmatprep.subr.mxu0 0.0
        %660 = vmatpush1.msra.mxu0 0.0
        %661 = vmatprep.mubr.f32.mxu0 0.0
        %662 = vmatmul.mubr.f32.gmra.mrb[0].mxu0 %v586
        %v663 = vpop.f32.mrb[0].mxu0
        %v664 = vadd.f32 %v567, %v663
        %v665 = vpop.f32.mrb[0].mxu0
        %666 = vmatprep.mubr.f32.mxu0 0.0
        %667 = vmatmul.mubr.f32.gmra.mrb[0].mxu0 %v589
        %v668 = vpop.f32.mrb[0].mxu0
        %v669 = vadd.f32 %v572, %v668
        %v670 = vpop.f32.mrb[0].mxu0
        %671 = vmatprep.mubr.f32.mxu0 0.0
        %672 = vmatmul.mubr.f32.gmra.mrb[0].mxu0 %v592
        %v673 = vpop.f32.mrb[0].mxu0
        %v674 = vadd.f32 %v577, %v673
        %v675 = vpop.f32.mrb[0].mxu0
        %676 = vmatprep.mubr.f32.mxu0 0.0
        %677 = vmatmul.mubr.f32.gmra.mrb[0].mxu0 %v595
        %v678 = vpop.f32.mrb[0].mxu0
        %v679 = vadd.f32 %v582, %v678
        %v680 = vpop.f32.mrb[0].mxu0
        %681 = vdwg.mxu0
        %vm682 = vcmp.gt.f32.partialorder %v664, 0.0
        %vm683 = vcmp.gt.f32.partialorder %v669, 0.0
        %vm684 = vcmp.gt.f32.partialorder %v674, 0.0
        %vm685 = vcmp.gt.f32.partialorder %v679, 0.0
        %v686 = vmul.f32 %v664, 0.2
        %v687 = vmul.f32 %v669, 0.2
        %v688 = vmul.f32 %v674, 0.2
        %v689 = vmul.f32 %v679, 0.2
        %v690 = vsel %vm682, %v664, %v686
        %v691 = vsel %vm683, %v669, %v687
        %v692 = vsel %vm684, %v674, %v688
        %v693 = vsel %vm685, %v679, %v689
        %v694 = vld [vmem:[%s3] sm:$0xff]
        %v695 = vld [vmem:[%s3 + $0x8] sm:$0xff]
        %697 = vset.pattern.permute.xlu0 0
        %698 = vperm.xlu0 %697, %v344
        %v699 = vpop.permute.xlu0 %698
        %702 = vset.pattern.permute.xlu0 0
        %703 = vperm.xlu0 %702, %v345
        %v704 = vpop.permute.xlu0 %703
        %v707 = vsel %vm406, %v694, 0
        %v710 = vsel %vm406, %v695, 0
        %712 = vmatprep.subr.mxu0 0.0
        %713 = vmatpush1.msra.mxu0 %v690
        %714 = vmatprep.subr.mxu0 0.0
        %715 = vmatpush1.msra.mxu0 %v691
        %716 = vmatprep.subr.mxu0 0.0
        %717 = vmatpush1.msra.mxu0 %v692
        %718 = vmatprep.subr.mxu0 0.0
        %719 = vmatpush1.msra.mxu0 %v693
        %720 = vmatprep.subr.mxu0 0.0
        %721 = vmatpush1.msra.mxu0 0.0
        %722 = vmatprep.subr.mxu0 0.0
        %723 = vmatpush1.msra.mxu0 0.0
        %724 = vmatprep.subr.mxu0 0.0
        %725 = vmatpush1.msra.mxu0 0.0
        %726 = vmatprep.subr.mxu0 0.0
        %727 = vmatpush1.msra.mxu0 0.0
        %728 = vmatprep.subr.mxu0 0.0
        %729 = vmatpush1.msra.mxu0 0.0
        %730 = vmatprep.subr.mxu0 0.0
        %731 = vmatpush1.msra.mxu0 0.0
        %732 = vmatprep.subr.mxu0 0.0
        %733 = vmatpush1.msra.mxu0 0.0
        %734 = vmatprep.subr.mxu0 0.0
        %735 = vmatpush1.msra.mxu0 0.0
        %736 = vmatprep.subr.mxu0 0.0
        %737 = vmatpush1.msra.mxu0 0.0
        %738 = vmatprep.subr.mxu0 0.0
        %739 = vmatpush1.msra.mxu0 0.0
        %740 = vmatprep.subr.mxu0 0.0
        %741 = vmatpush1.msra.mxu0 0.0
        %742 = vmatprep.subr.mxu0 0.0
        %743 = vmatpush1.msra.mxu0 0.0
        %744 = vmatprep.subr.mxu0 0.0
        %745 = vmatpush1.msra.mxu0 0.0
        %746 = vmatprep.subr.mxu0 0.0
        %747 = vmatpush1.msra.mxu0 0.0
        %748 = vmatprep.subr.mxu0 0.0
        %749 = vmatpush1.msra.mxu0 0.0
        %750 = vmatprep.subr.mxu0 0.0
        %751 = vmatpush1.msra.mxu0 0.0
        %752 = vmatprep.subr.mxu0 0.0
        %753 = vmatpush1.msra.mxu0 0.0
        %754 = vmatprep.subr.mxu0 0.0
        %755 = vmatpush1.msra.mxu0 0.0
        %756 = vmatprep.subr.mxu0 0.0
        %757 = vmatpush1.msra.mxu0 0.0
        %758 = vmatprep.subr.mxu0 0.0
        %759 = vmatpush1.msra.mxu0 0.0
        %760 = vmatprep.subr.mxu0 0.0
        %761 = vmatpush1.msra.mxu0 0.0
        %762 = vmatprep.subr.mxu0 0.0
        %763 = vmatpush1.msra.mxu0 0.0
        %764 = vmatprep.subr.mxu0 0.0
        %765 = vmatpush1.msra.mxu0 0.0
        %766 = vmatprep.subr.mxu0 0.0
        %767 = vmatpush1.msra.mxu0 0.0
        %768 = vmatprep.subr.mxu0 0.0
        %769 = vmatpush1.msra.mxu0 0.0
        %770 = vmatprep.subr.mxu0 0.0
        %771 = vmatpush1.msra.mxu0 0.0
        %772 = vmatprep.subr.mxu0 0.0
        %773 = vmatpush1.msra.mxu0 0.0
        %774 = vmatprep.subr.mxu0 0.0
        %775 = vmatpush1.msra.mxu0 0.0
        %776 = vmatprep.mubr.f32.mxu0 0.0
        %777 = vmatmul.mubr.f32.gmra.mrb[0].mxu0 %v707
        %v778 = vpop.f32.mrb[0].mxu0
        %v779 = vadd.f32 %v699, %v778
        %v780 = vpop.f32.mrb[0].mxu0
        %781 = vmatprep.mubr.f32.mxu0 0.0
        %782 = vmatmul.mubr.f32.gmra.mrb[0].mxu0 %v710
        %v783 = vpop.f32.mrb[0].mxu0
        %v784 = vadd.f32 %v704, %v783
        %v785 = vpop.f32.mrb[0].mxu0
        %786 = vdwg.mxu0
        %v787 = vmul.f32 %v784, 1.442695
        %v788 = vpow.pop %v787
        %v789 = vmul.f32 %v331, %v788
        %v790 = vadd.f32 %v779, %v789
        %v791 = vld [vmem:[%s4] sm:$0xff]
        %v792 = vld [vmem:[%s4 + $0x8] sm:$0xff]
        %v793 = vld [vmem:[%s4 + $0x10] sm:$0xff]
        %v794 = vld [vmem:[%s4 + $0x18] sm:$0xff]
        %v795 = vld [vmem:[%s4 + $0x20] sm:$0xff]
        %v796 = vld [vmem:[%s4 + $0x28] sm:$0xff]
        %v797 = vld [vmem:[%s4 + $0x30] sm:$0xff]
        %v798 = vld [vmem:[%s4 + $0x38] sm:$0xff]
        %800 = vset.pattern.permute.xlu0 0
        %801 = vperm.xlu0 %800, %v346
        %v802 = vpop.permute.xlu0 %801
        %805 = vset.pattern.permute.xlu0 0
        %806 = vperm.xlu0 %805, %v347
        %v807 = vpop.permute.xlu0 %806
        %810 = vset.pattern.permute.xlu0 0
        %811 = vperm.xlu0 %810, %v348
        %v812 = vpop.permute.xlu0 %811
        %815 = vset.pattern.permute.xlu0 0
        %816 = vperm.xlu0 %815, %v349
        %v817 = vpop.permute.xlu0 %816
        %820 = vset.pattern.permute.xlu0 0
        %821 = vperm.xlu0 %820, %v350
        %v822 = vpop.permute.xlu0 %821
        %825 = vset.pattern.permute.xlu0 0
        %826 = vperm.xlu0 %825, %v351
        %v827 = vpop.permute.xlu0 %826
        %830 = vset.pattern.permute.xlu0 0
        %831 = vperm.xlu0 %830, %v352
        %v832 = vpop.permute.xlu0 %831
        %835 = vset.pattern.permute.xlu0 0
        %836 = vperm.xlu0 %835, %v353
        %v837 = vpop.permute.xlu0 %836
        %vm839 = vcmask 64512
        %v841 = vsel %vm839, %v791, 0
        %v844 = vsel %vm839, %v792, 0
        %v847 = vsel %vm839, %v793, 0
        %v850 = vsel %vm839, %v794, 0
        %v853 = vsel %vm839, %v795, 0
        %v856 = vsel %vm839, %v796, 0
        %v859 = vsel %vm839, %v797, 0
        %v862 = vsel %vm839, %v798, 0
        %864 = vmatprep.subr.mxu0 0.0
        %865 = vmatpush1.msra.mxu0 %v790
        %866 = vmatprep.subr.mxu0 0.0
        %867 = vmatpush1.msra.mxu0 0.0
        %868 = vmatprep.subr.mxu0 0.0
        %869 = vmatpush1.msra.mxu0 0.0
        %870 = vmatprep.subr.mxu0 0.0
        %871 = vmatpush1.msra.mxu0 0.0
        %872 = vmatprep.subr.mxu0 0.0
        %873 = vmatpush1.msra.mxu0 0.0
        %874 = vmatprep.subr.mxu0 0.0
        %875 = vmatpush1.msra.mxu0 0.0
        %876 = vmatprep.subr.mxu0 0.0
        %877 = vmatpush1.msra.mxu0 0.0
        %878 = vmatprep.subr.mxu0 0.0
        %879 = vmatpush1.msra.mxu0 0.0
        %880 = vmatprep.subr.mxu0 0.0
        %881 = vmatpush1.msra.mxu0 0.0
        %882 = vmatprep.subr.mxu0 0.0
        %883 = vmatpush1.msra.mxu0 0.0
        %884 = vmatprep.subr.mxu0 0.0
        %885 = vmatpush1.msra.mxu0 0.0
        %886 = vmatprep.subr.mxu0 0.0
        %887 = vmatpush1.msra.mxu0 0.0
        %888 = vmatprep.subr.mxu0 0.0
        %889 = vmatpush1.msra.mxu0 0.0
        %890 = vmatprep.subr.mxu0 0.0
        %891 = vmatpush1.msra.mxu0 0.0
        %892 = vmatprep.subr.mxu0 0.0
        %893 = vmatpush1.msra.mxu0 0.0
        %894 = vmatprep.subr.mxu0 0.0
        %895 = vmatpush1.msra.mxu0 0.0
        %896 = vmatprep.subr.mxu0 0.0
        %897 = vmatpush1.msra.mxu0 0.0
        %898 = vmatprep.subr.mxu0 0.0
        %899 = vmatpush1.msra.mxu0 0.0
        %900 = vmatprep.subr.mxu0 0.0
        %901 = vmatpush1.msra.mxu0 0.0
        %902 = vmatprep.subr.mxu0 0.0
        %903 = vmatpush1.msra.mxu0 0.0
        %904 = vmatprep.subr.mxu0 0.0
        %905 = vmatpush1.msra.mxu0 0.0
        %906 = vmatprep.subr.mxu0 0.0
        %907 = vmatpush1.msra.mxu0 0.0
        %908 = vmatprep.subr.mxu0 0.0
        %909 = vmatpush1.msra.mxu0 0.0
        %910 = vmatprep.subr.mxu0 0.0
        %911 = vmatpush1.msra.mxu0 0.0
        %912 = vmatprep.subr.mxu0 0.0
        %913 = vmatpush1.msra.mxu0 0.0
        %914 = vmatprep.subr.mxu0 0.0
        %915 = vmatpush1.msra.mxu0 0.0
        %916 = vmatprep.subr.mxu0 0.0
        %917 = vmatpush1.msra.mxu0 0.0
        %918 = vmatprep.subr.mxu0 0.0
        %919 = vmatpush1.msra.mxu0 0.0
        %920 = vmatprep.subr.mxu0 0.0
        %921 = vmatpush1.msra.mxu0 0.0
        %922 = vmatprep.subr.mxu0 0.0
        %923 = vmatpush1.msra.mxu0 0.0
        %924 = vmatprep.subr.mxu0 0.0
        %925 = vmatpush1.msra.mxu0 0.0
        %926 = vmatprep.subr.mxu0 0.0
        %927 = vmatpush1.msra.mxu0 0.0
        %928 = vmatprep.mubr.f32.mxu0 0.0
        %929 = vmatmul.mubr.f32.gmra.mrb[0].mxu0 %v841
        %v930 = vpop.f32.mrb[0].mxu0
        %v931 = vadd.f32 %v802, %v930
        %v932 = vpop.f32.mrb[0].mxu0
        %933 = vmatprep.mubr.f32.mxu0 0.0
        %934 = vmatmul.mubr.f32.gmra.mrb[0].mxu0 %v844
        %v935 = vpop.f32.mrb[0].mxu0
        %v936 = vadd.f32 %v807, %v935
        %v937 = vpop.f32.mrb[0].mxu0
        %938 = vmatprep.mubr.f32.mxu0 0.0
        %939 = vmatmul.mubr.f32.gmra.mrb[0].mxu0 %v847
        %v940 = vpop.f32.mrb[0].mxu0
        %v941 = vadd.f32 %v812, %v940
        %v942 = vpop.f32.mrb[0].mxu0
        %943 = vmatprep.mubr.f32.mxu0 0.0
        %944 = vmatmul.mubr.f32.gmra.mrb[0].mxu0 %v850
        %v945 = vpop.f32.mrb[0].mxu0
        %v946 = vadd.f32 %v817, %v945
        %v947 = vpop.f32.mrb[0].mxu0
        %948 = vmatprep.mubr.f32.mxu0 0.0
        %949 = vmatmul.mubr.f32.gmra.mrb[0].mxu0 %v853
        %v950 = vpop.f32.mrb[0].mxu0
        %v951 = vadd.f32 %v822, %v950
        %v952 = vpop.f32.mrb[0].mxu0
        %953 = vmatprep.mubr.f32.mxu0 0.0
        %954 = vmatmul.mubr.f32.gmra.mrb[0].mxu0 %v856
        %v955 = vpop.f32.mrb[0].mxu0
        %v956 = vadd.f32 %v827, %v955
        %v957 = vpop.f32.mrb[0].mxu0
        %958 = vmatprep.mubr.f32.mxu0 0.0
        %959 = vmatmul.mubr.f32.gmra.mrb[0].mxu0 %v859
        %v960 = vpop.f32.mrb[0].mxu0
        %v961 = vadd.f32 %v832, %v960
        %v962 = vpop.f32.mrb[0].mxu0
        %963 = vmatprep.mubr.f32.mxu0 0.0
        %964 = vmatmul.mubr.f32.gmra.mrb[0].mxu0 %v862
        %v965 = vpop.f32.mrb[0].mxu0
        %v966 = vadd.f32 %v837, %v965
        %v967 = vpop.f32.mrb[0].mxu0
        %968 = vdwg.mxu0
        %v969 = vmax.f32 %v931, 0.0
        %v970 = vmax.f32 %v936, 0.0
        %v971 = vmax.f32 %v941, 0.0
        %v972 = vmax.f32 %v946, 0.0
        %v973 = vmax.f32 %v951, 0.0
        %v974 = vmax.f32 %v956, 0.0
        %v975 = vmax.f32 %v961, 0.0
        %v976 = vmax.f32 %v966, 0.0
        %v977 = vld [vmem:[%s5] sm:$0xff]
        %v978 = vld [vmem:[%s5 + $0x8] sm:$0xff]
        %v979 = vld [vmem:[%s5 + $0x10] sm:$0xff]
        %v980 = vld [vmem:[%s5 + $0x18] sm:$0xff]
        %982 = vset.pattern.permute.xlu0 0
        %983 = vperm.xlu0 %982, %v354
        %v984 = vpop.permute.xlu0 %983
        %987 = vset.pattern.permute.xlu0 0
        %988 = vperm.xlu0 %987, %v355
        %v989 = vpop.permute.xlu0 %988
        %992 = vset.pattern.permute.xlu0 0
        %993 = vperm.xlu0 %992, %v356
        %v994 = vpop.permute.xlu0 %993
        %997 = vset.pattern.permute.xlu0 0
        %998 = vperm.xlu0 %997, %v357
        %v999 = vpop.permute.xlu0 %998
        %v1002 = vsel %vm584, %v977, 0
        %v1005 = vsel %vm584, %v978, 0
        %v1008 = vsel %vm584, %v979, 0
        %v1011 = vsel %vm584, %v980, 0
        %1013 = vmatprep.subr.mxu0 0.0
        %1014 = vmatpush1.msra.mxu0 %v969
        %1015 = vmatprep.subr.mxu0 0.0
        %1016 = vmatpush1.msra.mxu0 %v970
        %1017 = vmatprep.subr.mxu0 0.0
        %1018 = vmatpush1.msra.mxu0 %v971
        %1019 = vmatprep.subr.mxu0 0.0
        %1020 = vmatpush1.msra.mxu0 %v972
        %1021 = vmatprep.subr.mxu0 0.0
        %1022 = vmatpush1.msra.mxu0 %v973
        %1023 = vmatprep.subr.mxu0 0.0
        %1024 = vmatpush1.msra.mxu0 %v974
        %1025 = vmatprep.subr.mxu0 0.0
        %1026 = vmatpush1.msra.mxu0 %v975
        %1027 = vmatprep.subr.mxu0 0.0
        %1028 = vmatpush1.msra.mxu0 %v976
        %1029 = vmatprep.subr.mxu0 0.0
        %1030 = vmatpush1.msra.mxu0 0.0
        %1031 = vmatprep.subr.mxu0 0.0
        %1032 = vmatpush1.msra.mxu0 0.0
        %1033 = vmatprep.subr.mxu0 0.0
        %1034 = vmatpush1.msra.mxu0 0.0
        %1035 = vmatprep.subr.mxu0 0.0
        %1036 = vmatpush1.msra.mxu0 0.0
        %1037 = vmatprep.subr.mxu0 0.0
        %1038 = vmatpush1.msra.mxu0 0.0
        %1039 = vmatprep.subr.mxu0 0.0
        %1040 = vmatpush1.msra.mxu0 0.0
        %1041 = vmatprep.subr.mxu0 0.0
        %1042 = vmatpush1.msra.mxu0 0.0
        %1043 = vmatprep.subr.mxu0 0.0
        %1044 = vmatpush1.msra.mxu0 0.0
        %1045 = vmatprep.subr.mxu0 0.0
        %1046 = vmatpush1.msra.mxu0 0.0
        %1047 = vmatprep.subr.mxu0 0.0
        %1048 = vmatpush1.msra.mxu0 0.0
        %1049 = vmatprep.subr.mxu0 0.0
        %1050 = vmatpush1.msra.mxu0 0.0
        %1051 = vmatprep.subr.mxu0 0.0
        %1052 = vmatpush1.msra.mxu0 0.0
        %1053 = vmatprep.subr.mxu0 0.0
        %1054 = vmatpush1.msra.mxu0 0.0
        %1055 = vmatprep.subr.mxu0 0.0
        %1056 = vmatpush1.msra.mxu0 0.0
        %1057 = vmatprep.subr.mxu0 0.0
        %1058 = vmatpush1.msra.mxu0 0.0
        %1059 = vmatprep.subr.mxu0 0.0
        %1060 = vmatpush1.msra.mxu0 0.0
        %1061 = vmatprep.subr.mxu0 0.0
        %1062 = vmatpush1.msra.mxu0 0.0
        %1063 = vmatprep.subr.mxu0 0.0
        %1064 = vmatpush1.msra.mxu0 0.0
        %1065 = vmatprep.subr.mxu0 0.0
        %1066 = vmatpush1.msra.mxu0 0.0
        %1067 = vmatprep.subr.mxu0 0.0
        %1068 = vmatpush1.msra.mxu0 0.0
        %1069 = vmatprep.subr.mxu0 0.0
        %1070 = vmatpush1.msra.mxu0 0.0
        %1071 = vmatprep.subr.mxu0 0.0
        %1072 = vmatpush1.msra.mxu0 0.0
        %1073 = vmatprep.subr.mxu0 0.0
        %1074 = vmatpush1.msra.mxu0 0.0
        %1075 = vmatprep.subr.mxu0 0.0
        %1076 = vmatpush1.msra.mxu0 0.0
        %1077 = vmatprep.mubr.f32.mxu0 0.0
        %1078 = vmatmul.mubr.f32.gmra.mrb[0].mxu0 %v1002
        %v1079 = vpop.f32.mrb[0].mxu0
        %v1080 = vadd.f32 %v984, %v1079
        %v1081 = vpop.f32.mrb[0].mxu0
        %1082 = vmatprep.mubr.f32.mxu0 0.0
        %1083 = vmatmul.mubr.f32.gmra.mrb[0].mxu0 %v1005
        %v1084 = vpop.f32.mrb[0].mxu0
        %v1085 = vadd.f32 %v989, %v1084
        %v1086 = vpop.f32.mrb[0].mxu0
        %1087 = vmatprep.mubr.f32.mxu0 0.0
        %1088 = vmatmul.mubr.f32.gmra.mrb[0].mxu0 %v1008
        %v1089 = vpop.f32.mrb[0].mxu0
        %v1090 = vadd.f32 %v994, %v1089
        %v1091 = vpop.f32.mrb[0].mxu0
        %1092 = vmatprep.mubr.f32.mxu0 0.0
        %1093 = vmatmul.mubr.f32.gmra.mrb[0].mxu0 %v1011
        %v1094 = vpop.f32.mrb[0].mxu0
        %v1095 = vadd.f32 %v999, %v1094
        %v1096 = vpop.f32.mrb[0].mxu0
        %1097 = vdwg.mxu0
        %1098 = vst [vmem:[%s326] sm:$0xff] %v1080
        %1099 = vst [vmem:[%s326 + $0x8] sm:$0xff] %v1085
        %1100 = vst [vmem:[%s326 + $0x10] sm:$0xff] %v1090
        %1101 = vst [vmem:[%s326 + $0x18] sm:$0xff] %v1095
        %1102 = vst [vmem:[%s326 + $0x20] sm:$0xff] %v779
        %1103 = vst [vmem:[%s326 + $0x28] sm:$0xff] %v784
        %s1104 = sand.u32 %s181, 1
        %s1105 = scalar_lea.sflag [#allocation4], %s1104
        %s1106 = sand.u32 %s181, 1
        %s1107 = smul.addr %s1106, 48
        %s1108 = scalar_lea.vmem [#allocation3], %s1107
        // Predicated region
        $region87: #{tpu_custom_call.1} parent=81 // pred_check
          %p1109 = pneg %p191
        $region88: #{tpu_custom_call.1} parent=81 // pred_check_branch
          %1111 = sbr.rel (%p1109) target = $region90
        $region89: #{tpu_custom_call.1} parent=81 // pred_region
          %s1113 = ssub.s32 768, 768
          %1114 = vsyncadd %s1105, %s1113
          %s1115 = smul.addr %s21, 128
          %s1116 = scalar_lea.hbm %s7, %s1115
          %s1117 = sshll.u32 %s1108, 4
          %s1118 = int_to_ptr.vmem [resolvable:$true] %s1117
          %1123 = dma.vmem_to_hbm [thread:$0]  %s1118, 768, %s1116, %s1105, 128, 256, 8
        $region90: #{tpu_custom_call.1} parent=81 // pred_fallthru
          _
      $region82: #{tpu_custom_call.1} parent=5 // pred_fallthru
        _
      %p1124 = scmp.le.s32.totalorder 2, %s16
      // Predicated region
      $region91: #{tpu_custom_call.1} parent=5 // pred_check
        %p1125 = pneg %p1124
      $region92: #{tpu_custom_call.1} parent=5 // pred_check_branch
        %1127 = sbr.rel (%p1125) target = $region94
      $region93: #{tpu_custom_call.1} parent=5 // pred_region
        %s1128 = ssub.s32 %s16, 2
        // Predicated region
        $region95: #{tpu_custom_call.1} parent=93 // pred_check
          %p1129 = pneg %p197
        $region96: #{tpu_custom_call.1} parent=93 // pred_check_branch
          %1131 = sbr.rel (%p1129) target = $region98
        $region97: #{tpu_custom_call.1} parent=93 // pred_region
          %s1132 = sand.u32 %s182, 1
          %s1133 = scalar_lea.sflag [#allocation4], %s1132
          %s1134 = sand.u32 %s182, 1
          %s1135 = smul.addr %s1134, 48
          %s1136 = scalar_lea.vmem [#allocation3], %s1135
          %1137 = dma.done %s1133, 768
        $region98: #{tpu_custom_call.1} parent=93 // pred_fallthru
          _
      $region94: #{tpu_custom_call.1} parent=5 // pred_fallthru
        _
    $region6: #{tpu_custom_call.1} parent=1 // loop_footer
      %s20 = sadd.s32 1, %s16
    $region7: #{tpu_custom_call.1} parent=1 // loop_footer_branch
      %15 = sbr.rel target = $region3
    $region8: #{tpu_custom_call.1} parent=1 // loop_exit
      _
    %1138 = vsyncpa [#allocation4], 1
    %s1139 = scalar_lea.sflag [#allocation4], 1
    %1140 = vsyncpa %s1139, 1

</llo_original>
